<compile_context>
chip_gen: v7x
topology: tpu7x:2x2x1
jax: 0.10.0
libtpu: 0.0.40
codegen_flags: <defaults>
</compile_context>

<pallas_src>
import functools

import jax
import jax.numpy as jnp
from jax.experimental import pallas as pl
from jax.experimental.pallas import tpu as pltpu


def _round_up(a, m):
    return (a + m - 1) // m * m


def fm_kernel(bias_ref, x_ref, vaug_ref, v2_ref, out_ref, *, num_factors):
    # bias_ref: (1,)        SMEM  f32 scalar bias w0
    # x_ref:    (TB, N)     VMEM  streamed dtype (f32 or bf16)
    # vaug_ref: (N, P)      VMEM  cols [:K]=V, col K = w, rest zero (x.dtype)
    # v2_ref:   (N, P)      VMEM  cols [:K]=V*V, rest zero (x.dtype)
    # out_ref:  (TB, 1)     VMEM  f32
    x = x_ref[...]
    v_aug = vaug_ref[...]
    v2 = v2_ref[...]

    # One fused MXU pass: columns < K carry x@V, column K carries x@w.
    xv = jnp.dot(x, v_aug, preferred_element_type=jnp.float32)      # (TB, P) f32
    x2v2 = jnp.dot(x * x, v2, preferred_element_type=jnp.float32)   # (TB, P) f32

    col = jax.lax.broadcasted_iota(jnp.int32, xv.shape, 1)
    # FM pairwise term over the first K (real factor) columns; padded / linear
    # columns are masked out (they are zero in v2 anyway).
    pair = jnp.where(col < num_factors, xv * xv - x2v2, 0.0)
    interaction = 0.5 * jnp.sum(pair, axis=-1, keepdims=True)        # (TB, 1)
    # Linear term lives in column K of the augmented product.
    linear = jnp.sum(jnp.where(col == num_factors, xv, 0.0),
                     axis=-1, keepdims=True)                         # (TB, 1)

    out_ref[...] = (bias_ref[0] + linear + interaction).astype(out_ref.dtype)


def fm_forward(x, w0, w, v, *, tile_b=None, vmem_limit_bytes=32 * 1024 * 1024):
    """Factorization Machine forward. x: (B, N) -> (B,) f32.

    x may be f32 or bf16; bf16 halves the dominant HBM stream while all
    accumulation stays in f32.
    """
    B, N = x.shape
    Nv, K = v.shape
    assert Nv == N
    dtype = x.dtype
    itemsize = jnp.dtype(dtype).itemsize

    # Lane-dense augmented RHS width (K factor cols + 1 linear col, padded to 128).
    P = _round_up(K + 1, 128)

    v_aug = jnp.zeros((N, P), jnp.float32)
    v_aug = v_aug.at[:, :K].set(v.astype(jnp.float32))
    v_aug = v_aug.at[:, K].set(w.astype(jnp.float32))
    v_aug = v_aug.astype(dtype)
    v2_pad = (jnp.zeros((N, P), jnp.float32)
              .at[:, :K].set((v.astype(jnp.float32) ** 2))
              .astype(dtype))

    bias = jnp.asarray(w0, jnp.float32).reshape(1)

    if tile_b is None:
        # Size the batch tile against the scoped-VMEM budget:
        #   2 double-buffered weight matrices + double-buffered x tile
        #   + (lane-padded) double-buffered output tile, with slack for temps.
        budget = vmem_limit_bytes - (4 << 20)
        weight_bytes = 2 * 2 * N * P * itemsize          # v_aug + v2_pad, 2 bufs each
        per_row = 2 * N * itemsize + 2 * 128 * 4          # x (2 bufs) + padded out (2 bufs)
        cap = max(8, (budget - weight_bytes) // per_row)
        tile_b = int(min(512, _round_up(B, 8), cap))
        tile_b = max(8, (tile_b // 8) * 8)
    assert tile_b % 8 == 0, "tile_b must satisfy the (8,128) sublane constraint"

    Bp = _round_up(B, tile_b)
    if Bp != B:
        x = jnp.pad(x, ((0, Bp - B), (0, 0)))
    grid = (Bp // tile_b,)

    out = pl.pallas_call(
        functools.partial(fm_kernel, num_factors=K),
        out_shape=jax.ShapeDtypeStruct((Bp, 1), jnp.float32),
        grid=grid,
        in_specs=[
            pl.BlockSpec(memory_space=pltpu.SMEM),                # bias scalar
            pl.BlockSpec((tile_b, N), lambda i: (i, 0)),          # x tile (streamed)
            pl.BlockSpec((N, P), lambda i: (0, 0)),               # V|w (resident)
            pl.BlockSpec((N, P), lambda i: (0, 0)),               # V^2 (resident)
        ],
        out_specs=pl.BlockSpec((tile_b, 1), lambda i: (i, 0)),
        compiler_params=pltpu.CompilerParams(
            dimension_semantics=("parallel",),
            vmem_limit_bytes=vmem_limit_bytes),
    )(bias, x, v_aug, v2_pad)
    return out[:B, 0]


def fm_reference(x, w0, w, v):
    x = x.astype(jnp.float32)
    hi = jax.lax.Precision.HIGHEST
    linear = jnp.dot(x, w, precision=hi)
    xv = jnp.dot(x, v, precision=hi)
    x2v2 = jnp.dot(x * x, v * v, precision=hi)
    inter = 0.5 * jnp.sum(xv * xv - x2v2, axis=-1)
    return w0 + linear + inter


if __name__ == "__main__":
    key = jax.random.PRNGKey(0)
    kx, kw, kv, kb = jax.random.split(key, 4)

    B, N, K = 256, 64, 16          # batch, num features, num latent factors
    x = jax.random.normal(kx, (B, N), dtype=jnp.float32)

    # Deterministic FM parameters (synthetic init, no checkpoint load).
    w0 = jax.random.normal(kb, (), dtype=jnp.float32) * 0.1
    w = jax.random.normal(kw, (N,), dtype=jnp.float32) * 0.1
    v = jax.random.normal(kv, (N, K), dtype=jnp.float32) * 0.1

    y_ref = fm_reference(x, w0, w, v)

    # f32 path with auto-selected batch tile.
    y = jax.block_until_ready(fm_forward(x, w0, w, v))
    assert y.shape == (B,)
    assert jnp.allclose(y, y_ref, atol=1e-3, rtol=1e-3), (y, y_ref)

    # Explicit multi-tile grid (exercises the pipelined x stream).
    y_tiled = jax.block_until_ready(fm_forward(x, w0, w, v, tile_b=64))
    assert jnp.allclose(y_tiled, y_ref, atol=1e-3, rtol=1e-3)

    # bf16-streamed x (halves HBM traffic of the dominant stream); f32 accumulate.
    # Loose tolerance: inputs are quantized to bf16, accumulation stays f32.
    y_bf16 = jax.block_until_ready(fm_forward(x.astype(jnp.bfloat16), w0, w, v))
    assert jnp.allclose(y_bf16, y_ref, atol=2e-1, rtol=5e-2)

    # TODO(synk): BaseModel's training/eval loops (Adam, AUC, NDCG, ranking
    # metrics) are host-side orchestration with no Pallas equivalent; only the
    # FM forward pass is kernelized.
    print("KERNEL_OK")
</pallas_src>

<mosaic_0001>
module attributes {stable_mosaic.version = 11 : i64} {
  func.func @fm_kernel(%arg0: i32, %arg1: memref<1xf32, #tpu.memory_space<smem>>, %arg2: memref<256x64xf32, #tpu.memory_space<vmem>>, %arg3: memref<64x128xf32, #tpu.memory_space<vmem>>, %arg4: memref<64x128xf32, #tpu.memory_space<vmem>>, %arg5: memref<256x1xf32, #tpu.memory_space<vmem>>) attributes {dimension_semantics = [#tpu.dimension_semantics<parallel>], iteration_bounds = array<i64: 1>, scalar_prefetch = 0 : i64, scratch_operands = 0 : i64, tpu.core_type = #tpu.core_type<tc>, window_params = [{transform_indices = @transform_0, window_bounds = array<i64: 1>}, {transform_indices = @transform_1, window_bounds = array<i64: 256, 64>}, {pipeline_mode = #tpu.pipeline_mode<synchronous>, transform_indices = @transform_2, window_bounds = array<i64: 64, 128>}, {pipeline_mode = #tpu.pipeline_mode<synchronous>, transform_indices = @transform_3, window_bounds = array<i64: 64, 128>}, {transform_indices = @transform_4, window_bounds = array<i64: 256, 1>}]} {
    %c0 = arith.constant 0 : index
    %c0_0 = arith.constant 0 : index
    %0 = vector.load %arg2[%c0, %c0_0] : memref<256x64xf32, #tpu.memory_space<vmem>>, vector<256x64xf32>
    %c0_1 = arith.constant 0 : index
    %c0_2 = arith.constant 0 : index
    %1 = vector.load %arg3[%c0_1, %c0_2] : memref<64x128xf32, #tpu.memory_space<vmem>>, vector<64x128xf32>
    %c0_3 = arith.constant 0 : index
    %c0_4 = arith.constant 0 : index
    %2 = vector.load %arg4[%c0_3, %c0_4] : memref<64x128xf32, #tpu.memory_space<vmem>>, vector<64x128xf32>
    %cst = arith.constant dense<0.000000e+00> : vector<256x128xf32>
    %3 = tpu.matmul %0, %1, %cst {dimension_numbers = #tpu.dot_dimension_numbers<[1], [0], [0], [1], [0, 0, 1, 1], [], []>} : vector<256x64xf32>, vector<64x128xf32>, vector<256x128xf32> -> vector<256x128xf32>
    %4 = arith.mulf %0, %0 : vector<256x64xf32>
    %cst_5 = arith.constant dense<0.000000e+00> : vector<256x128xf32>
    %5 = tpu.matmul %4, %2, %cst_5 {dimension_numbers = #tpu.dot_dimension_numbers<[1], [0], [0], [1], [0, 0, 1, 1], [], []>} : vector<256x64xf32>, vector<64x128xf32>, vector<256x128xf32> -> vector<256x128xf32>
    %6 = tpu.iota {dimensions = array<i32: 1>} : vector<256x128xi32>
    %c16_i32 = arith.constant 16 : i32
    %7 = vector.broadcast %c16_i32 : i32 to vector<256x128xi32>
    %8 = arith.cmpi slt, %6, %7 : vector<256x128xi32>
    %9 = arith.mulf %3, %3 : vector<256x128xf32>
    %10 = arith.subf %9, %5 : vector<256x128xf32>
    %cst_6 = arith.constant 0.000000e+00 : f32
    %11 = vector.broadcast %cst_6 : f32 to vector<256x128xf32>
    %12 = arith.select %8, %10, %11 : vector<256x128xi1>, vector<256x128xf32>
    %cst_7 = arith.constant dense<0.000000e+00> : vector<256xf32>
    %13 = vector.multi_reduction <add>, %12, %cst_7 [1] : vector<256x128xf32> to vector<256xf32>
    %14 = vector.shape_cast %13 : vector<256xf32> to vector<256x1xf32>
    %cst_8 = arith.constant 5.000000e-01 : f32
    %15 = vector.broadcast %cst_8 : f32 to vector<256x1xf32>
    %16 = arith.mulf %15, %14 : vector<256x1xf32>
    %c16_i32_9 = arith.constant 16 : i32
    %17 = vector.broadcast %c16_i32_9 : i32 to vector<256x128xi32>
    %18 = arith.cmpi eq, %6, %17 : vector<256x128xi32>
    %cst_10 = arith.constant 0.000000e+00 : f32
    %19 = vector.broadcast %cst_10 : f32 to vector<256x128xf32>
    %20 = arith.select %18, %3, %19 : vector<256x128xi1>, vector<256x128xf32>
    %cst_11 = arith.constant dense<0.000000e+00> : vector<256xf32>
    %21 = vector.multi_reduction <add>, %20, %cst_11 [1] : vector<256x128xf32> to vector<256xf32>
    %22 = vector.shape_cast %21 : vector<256xf32> to vector<256x1xf32>
    %c0_12 = arith.constant 0 : index
    %23 = memref.load %arg1[%c0_12] : memref<1xf32, #tpu.memory_space<smem>>
    %24 = vector.broadcast %23 : f32 to vector<256x1xf32>
    %25 = arith.addf %24, %22 : vector<256x1xf32>
    %26 = arith.addf %25, %16 : vector<256x1xf32>
    %c0_13 = arith.constant 0 : index
    %c0_14 = arith.constant 0 : index
    %27 = vector.load %arg5[%c0_13, %c0_14] : memref<256x1xf32, #tpu.memory_space<vmem>>, vector<256x1xf32>
    tpu.vector_store %arg5[%c0_13, %c0_14], %26 {strides = array<i32>} : memref<256x1xf32, #tpu.memory_space<vmem>>, vector<256x1xf32>,
    return
  }
  func.func @transform_0(%arg0: i32) -> i32 {
    %c0_i32 = arith.constant 0 : i32
    %c0_i32_0 = arith.constant 0 : i32
    return %c0_i32 : i32
  }
  func.func @transform_1(%arg0: i32) -> (i32, i32) {
    %c0_i32 = arith.constant 0 : i32
    %c0_i32_0 = arith.constant 0 : i32
    return %arg0, %c0_i32 : i32, i32
  }
  func.func @transform_2(%arg0: i32) -> (i32, i32) {
    %c0_i32 = arith.constant 0 : i32
    %c0_i32_0 = arith.constant 0 : i32
    %c0_i32_1 = arith.constant 0 : i32
    return %c0_i32, %c0_i32_0 : i32, i32
  }
  func.func @transform_3(%arg0: i32) -> (i32, i32) {
    %c0_i32 = arith.constant 0 : i32
    %c0_i32_0 = arith.constant 0 : i32
    %c0_i32_1 = arith.constant 0 : i32
    return %c0_i32, %c0_i32_0 : i32, i32
  }
  func.func @transform_4(%arg0: i32) -> (i32, i32) {
    %c0_i32 = arith.constant 0 : i32
    %c0_i32_0 = arith.constant 0 : i32
    return %arg0, %c0_i32 : i32, i32
  }
}

</mosaic_0001>

<llo_original>
// kernel: tpu_custom_call.1
$region0: #{tpu_custom_call.1}
  #allocation0 [shape = 'u32[]', space=smem, size = 0x4, offset = 0x4, fixed_abs, tag = 'smem constant byte address 0x4 - core index']
  #allocation1 [shape = 'u32[144,128]{1,0:T(1,128)}', space=vmem, size = 0x12000, scoped, tag = 'internal scratch']
  #allocation2 [shape = 'f32[1]{0:T(128)S(6)}', space=smem, size = 0x200, scoped, tag = 'scoped memory for tpu_custom_call.1']
  %s0 = inlined_call_operand.<no memory space> [shape: f32[1], index: 0, kind: input, shape index: {}]
  %s1 = inlined_call_operand.vmem [shape: f32[256,64], index: 1, kind: input, shape index: {}]
  %s2 = inlined_call_operand.vmem [shape: f32[64,128], index: 2, kind: input, shape index: {}]
  %s3 = inlined_call_operand.vmem [shape: f32[64,128], index: 3, kind: input, shape index: {}]
  %s4 = inlined_call_operand.vmem [shape: f32[256,1], index: 4, kind: output, shape index: {}]
  %s5 = sld [smem:[#allocation0]]
  $region26: #{tpu_custom_call.1} parent=0
    _
  %s7 = ssub.s32 1, %s5
  %s8 = scalar_select 0, %s7, %s5
  %9 = sst [smem:[#allocation2]] %s0
  // Predicated region
  $region2: #{tpu_custom_call.1} parent=0 // pred_check
    _
  $region3: #{tpu_custom_call.1} parent=0 // pred_check_branch
    %11 = sbr.rel (0) target = $region5
  $region4: #{tpu_custom_call.1} parent=0 // pred_region
    _
  $region5: #{tpu_custom_call.1} parent=0 // pred_fallthru
    _
  // Predicated region
  $region6: #{tpu_custom_call.1} parent=0 // pred_check
    _
  $region7: #{tpu_custom_call.1} parent=0 // pred_check_branch
    %13 = sbr.rel (0) target = $region9
  $region8: #{tpu_custom_call.1} parent=0 // pred_region
    _
  $region9: #{tpu_custom_call.1} parent=0 // pred_fallthru
    _
  // Predicated region
  $region10: #{tpu_custom_call.1} parent=0 // pred_check
    _
  $region11: #{tpu_custom_call.1} parent=0 // pred_check_branch
    %15 = sbr.rel (0) target = $region13
  $region12: #{tpu_custom_call.1} parent=0 // pred_region
    _
  $region13: #{tpu_custom_call.1} parent=0 // pred_fallthru
    _
  // Predicated region
  $region14: #{tpu_custom_call.1} parent=0 // pred_check
    _
  $region15: #{tpu_custom_call.1} parent=0 // pred_check_branch
    %17 = sbr.rel (0) target = $region17
  $region16: #{tpu_custom_call.1} parent=0 // pred_region
    _
  $region17: #{tpu_custom_call.1} parent=0 // pred_fallthru
    _
  %v18 = vld [vmem:[%s1] sm:$0xff]
  %v19 = vld [vmem:[%s1 + $0x8] sm:$0xff]
  %v20 = vld [vmem:[%s1 + $0x10] sm:$0xff]
  %v21 = vld [vmem:[%s1 + $0x18] sm:$0xff]
  %v22 = vld [vmem:[%s1 + $0x20] sm:$0xff]
  %v23 = vld [vmem:[%s1 + $0x28] sm:$0xff]
  %v24 = vld [vmem:[%s1 + $0x30] sm:$0xff]
  %v25 = vld [vmem:[%s1 + $0x38] sm:$0xff]
  %v26 = vld [vmem:[%s1 + $0x40] sm:$0xff]
  %v27 = vld [vmem:[%s1 + $0x48] sm:$0xff]
  %v28 = vld [vmem:[%s1 + $0x50] sm:$0xff]
  %v29 = vld [vmem:[%s1 + $0x58] sm:$0xff]
  %v30 = vld [vmem:[%s1 + $0x60] sm:$0xff]
  %v31 = vld [vmem:[%s1 + $0x68] sm:$0xff]
  %v32 = vld [vmem:[%s1 + $0x70] sm:$0xff]
  %v33 = vld [vmem:[%s1 + $0x78] sm:$0xff]
  %v34 = vld [vmem:[%s1 + $0x80] sm:$0xff]
  %v35 = vld [vmem:[%s1 + $0x88] sm:$0xff]
  %v36 = vld [vmem:[%s1 + $0x90] sm:$0xff]
  %v37 = vld [vmem:[%s1 + $0x98] sm:$0xff]
  %v38 = vld [vmem:[%s1 + $0xa0] sm:$0xff]
  %v39 = vld [vmem:[%s1 + $0xa8] sm:$0xff]
  %v40 = vld [vmem:[%s1 + $0xb0] sm:$0xff]
  %v41 = vld [vmem:[%s1 + $0xb8] sm:$0xff]
  %v42 = vld [vmem:[%s1 + $0xc0] sm:$0xff]
  %v43 = vld [vmem:[%s1 + $0xc8] sm:$0xff]
  %v44 = vld [vmem:[%s1 + $0xd0] sm:$0xff]
  %v45 = vld [vmem:[%s1 + $0xd8] sm:$0xff]
  %v46 = vld [vmem:[%s1 + $0xe0] sm:$0xff]
  %v47 = vld [vmem:[%s1 + $0xe8] sm:$0xff]
  %v48 = vld [vmem:[%s1 + $0xf0] sm:$0xff]
  %v49 = vld [vmem:[%s1 + $0xf8] sm:$0xff]
  %v50 = vld [vmem:[%s2] sm:$0xff]
  %v51 = vld [vmem:[%s2 + $0x8] sm:$0xff]
  %v52 = vld [vmem:[%s2 + $0x10] sm:$0xff]
  %v53 = vld [vmem:[%s2 + $0x18] sm:$0xff]
  %v54 = vld [vmem:[%s2 + $0x20] sm:$0xff]
  %v55 = vld [vmem:[%s2 + $0x28] sm:$0xff]
  %v56 = vld [vmem:[%s2 + $0x30] sm:$0xff]
  %v57 = vld [vmem:[%s2 + $0x38] sm:$0xff]
  %v58 = vld [vmem:[%s3] sm:$0xff]
  %v59 = vld [vmem:[%s3 + $0x8] sm:$0xff]
  %v60 = vld [vmem:[%s3 + $0x10] sm:$0xff]
  %v61 = vld [vmem:[%s3 + $0x18] sm:$0xff]
  %v62 = vld [vmem:[%s3 + $0x20] sm:$0xff]
  %v63 = vld [vmem:[%s3 + $0x28] sm:$0xff]
  %v64 = vld [vmem:[%s3 + $0x30] sm:$0xff]
  %v65 = vld [vmem:[%s3 + $0x38] sm:$0xff]
  %vm66 = vcmask 523264
  %v68 = vsel %vm66, %v18, 0
  %v71 = vsel %vm66, %v19, 0
  %v74 = vsel %vm66, %v20, 0
  %v77 = vsel %vm66, %v21, 0
  %v80 = vsel %vm66, %v22, 0
  %v83 = vsel %vm66, %v23, 0
  %v86 = vsel %vm66, %v24, 0
  %v89 = vsel %vm66, %v25, 0
  %v92 = vsel %vm66, %v26, 0
  %v95 = vsel %vm66, %v27, 0
  %v98 = vsel %vm66, %v28, 0
  %v101 = vsel %vm66, %v29, 0
  %v104 = vsel %vm66, %v30, 0
  %v107 = vsel %vm66, %v31, 0
  %v110 = vsel %vm66, %v32, 0
  %v113 = vsel %vm66, %v33, 0
  %v116 = vsel %vm66, %v34, 0
  %v119 = vsel %vm66, %v35, 0
  %v122 = vsel %vm66, %v36, 0
  %v125 = vsel %vm66, %v37, 0
  %v128 = vsel %vm66, %v38, 0
  %v131 = vsel %vm66, %v39, 0
  %v134 = vsel %vm66, %v40, 0
  %v137 = vsel %vm66, %v41, 0
  %v140 = vsel %vm66, %v42, 0
  %v143 = vsel %vm66, %v43, 0
  %v146 = vsel %vm66, %v44, 0
  %v149 = vsel %vm66, %v45, 0
  %v152 = vsel %vm66, %v46, 0
  %v155 = vsel %vm66, %v47, 0
  %v158 = vsel %vm66, %v48, 0
  %v161 = vsel %vm66, %v49, 0
  %163 = vmatprep.subr.mxu0 0.0
  %164 = vmatpush1.msra.mxu0 %v50
  %165 = vmatprep.subr.mxu0 0.0
  %166 = vmatpush1.msra.mxu0 %v51
  %167 = vmatprep.subr.mxu0 0.0
  %168 = vmatpush1.msra.mxu0 %v52
  %169 = vmatprep.subr.mxu0 0.0
  %170 = vmatpush1.msra.mxu0 %v53
  %171 = vmatprep.subr.mxu0 0.0
  %172 = vmatpush1.msra.mxu0 %v54
  %173 = vmatprep.subr.mxu0 0.0
  %174 = vmatpush1.msra.mxu0 %v55
  %175 = vmatprep.subr.mxu0 0.0
  %176 = vmatpush1.msra.mxu0 %v56
  %177 = vmatprep.subr.mxu0 0.0
  %178 = vmatpush1.msra.mxu0 %v57
  %179 = vmatprep.subr.mxu0 0.0
  %180 = vmatpush1.msra.mxu0 0.0
  %181 = vmatprep.subr.mxu0 0.0
  %182 = vmatpush1.msra.mxu0 0.0
  %183 = vmatprep.subr.mxu0 0.0
  %184 = vmatpush1.msra.mxu0 0.0
  %185 = vmatprep.subr.mxu0 0.0
  %186 = vmatpush1.msra.mxu0 0.0
  %187 = vmatprep.subr.mxu0 0.0
  %188 = vmatpush1.msra.mxu0 0.0
  %189 = vmatprep.subr.mxu0 0.0
  %190 = vmatpush1.msra.mxu0 0.0
  %191 = vmatprep.subr.mxu0 0.0
  %192 = vmatpush1.msra.mxu0 0.0
  %193 = vmatprep.subr.mxu0 0.0
  %194 = vmatpush1.msra.mxu0 0.0
  %195 = vmatprep.subr.mxu0 0.0
  %196 = vmatpush1.msra.mxu0 0.0
  %197 = vmatprep.subr.mxu0 0.0
  %198 = vmatpush1.msra.mxu0 0.0
  %199 = vmatprep.subr.mxu0 0.0
  %200 = vmatpush1.msra.mxu0 0.0
  %201 = vmatprep.subr.mxu0 0.0
  %202 = vmatpush1.msra.mxu0 0.0
  %203 = vmatprep.subr.mxu0 0.0
  %204 = vmatpush1.msra.mxu0 0.0
  %205 = vmatprep.subr.mxu0 0.0
  %206 = vmatpush1.msra.mxu0 0.0
  %207 = vmatprep.subr.mxu0 0.0
  %208 = vmatpush1.msra.mxu0 0.0
  %209 = vmatprep.subr.mxu0 0.0
  %210 = vmatpush1.msra.mxu0 0.0
  %211 = vmatprep.subr.mxu0 0.0
  %212 = vmatpush1.msra.mxu0 0.0
  %213 = vmatprep.subr.mxu0 0.0
  %214 = vmatpush1.msra.mxu0 0.0
  %215 = vmatprep.subr.mxu0 0.0
  %216 = vmatpush1.msra.mxu0 0.0
  %217 = vmatprep.subr.mxu0 0.0
  %218 = vmatpush1.msra.mxu0 0.0
  %219 = vmatprep.subr.mxu0 0.0
  %220 = vmatpush1.msra.mxu0 0.0
  %221 = vmatprep.subr.mxu0 0.0
  %222 = vmatpush1.msra.mxu0 0.0
  %223 = vmatprep.subr.mxu0 0.0
  %224 = vmatpush1.msra.mxu0 0.0
  %225 = vmatprep.subr.mxu0 0.0
  %226 = vmatpush1.msra.mxu0 0.0
  %227 = vmatprep.mubr.f32.mxu0 0.0
  %228 = vmatmul.mubr.f32.gmra.mrb[0].mxu0 %v68
  %v229 = vpop.f32.mrb[0].mxu0
  %v230 = vadd.f32 0.0, %v229
  %v231 = vpop.f32.mrb[0].mxu0
  %232 = vmatprep.mubr.f32.mxu0 0.0
  %233 = vmatmul.mubr.f32.gmra.mrb[0].mxu0 %v71
  %v234 = vpop.f32.mrb[0].mxu0
  %v235 = vadd.f32 0.0, %v234
  %v236 = vpop.f32.mrb[0].mxu0
  %237 = vmatprep.mubr.f32.mxu0 0.0
  %238 = vmatmul.mubr.f32.gmra.mrb[0].mxu0 %v74
  %v239 = vpop.f32.mrb[0].mxu0
  %v240 = vadd.f32 0.0, %v239
  %v241 = vpop.f32.mrb[0].mxu0
  %242 = vmatprep.mubr.f32.mxu0 0.0
  %243 = vmatmul.mubr.f32.gmra.mrb[0].mxu0 %v77
  %v244 = vpop.f32.mrb[0].mxu0
  %v245 = vadd.f32 0.0, %v244
  %v246 = vpop.f32.mrb[0].mxu0
  %247 = vmatprep.mubr.f32.mxu0 0.0
  %248 = vmatmul.mubr.f32.gmra.mrb[0].mxu0 %v80
  %v249 = vpop.f32.mrb[0].mxu0
  %v250 = vadd.f32 0.0, %v249
  %v251 = vpop.f32.mrb[0].mxu0
  %252 = vmatprep.mubr.f32.mxu0 0.0
  %253 = vmatmul.mubr.f32.gmra.mrb[0].mxu0 %v83
  %v254 = vpop.f32.mrb[0].mxu0
  %v255 = vadd.f32 0.0, %v254
  %v256 = vpop.f32.mrb[0].mxu0
  %257 = vmatprep.mubr.f32.mxu0 0.0
  %258 = vmatmul.mubr.f32.gmra.mrb[0].mxu0 %v86
  %v259 = vpop.f32.mrb[0].mxu0
  %v260 = vadd.f32 0.0, %v259
  %v261 = vpop.f32.mrb[0].mxu0
  %262 = vmatprep.mubr.f32.mxu0 0.0
  %263 = vmatmul.mubr.f32.gmra.mrb[0].mxu0 %v89
  %v264 = vpop.f32.mrb[0].mxu0
  %v265 = vadd.f32 0.0, %v264
  %v266 = vpop.f32.mrb[0].mxu0
  %267 = vmatprep.mubr.f32.mxu0 0.0
  %268 = vmatmul.mubr.f32.gmra.mrb[0].mxu0 %v92
  %v269 = vpop.f32.mrb[0].mxu0
  %v270 = vadd.f32 0.0, %v269
  %v271 = vpop.f32.mrb[0].mxu0
  %272 = vmatprep.mubr.f32.mxu0 0.0
  %273 = vmatmul.mubr.f32.gmra.mrb[0].mxu0 %v95
  %v274 = vpop.f32.mrb[0].mxu0
  %v275 = vadd.f32 0.0, %v274
  %v276 = vpop.f32.mrb[0].mxu0
  %277 = vmatprep.mubr.f32.mxu0 0.0
  %278 = vmatmul.mubr.f32.gmra.mrb[0].mxu0 %v98
  %v279 = vpop.f32.mrb[0].mxu0
  %v280 = vadd.f32 0.0, %v279
  %v281 = vpop.f32.mrb[0].mxu0
  %282 = vmatprep.mubr.f32.mxu0 0.0
  %283 = vmatmul.mubr.f32.gmra.mrb[0].mxu0 %v101
  %v284 = vpop.f32.mrb[0].mxu0
  %v285 = vadd.f32 0.0, %v284
  %v286 = vpop.f32.mrb[0].mxu0
  %287 = vmatprep.mubr.f32.mxu0 0.0
  %288 = vmatmul.mubr.f32.gmra.mrb[0].mxu0 %v104
  %v289 = vpop.f32.mrb[0].mxu0
  %v290 = vadd.f32 0.0, %v289
  %v291 = vpop.f32.mrb[0].mxu0
  %292 = vmatprep.mubr.f32.mxu0 0.0
  %293 = vmatmul.mubr.f32.gmra.mrb[0].mxu0 %v107
  %v294 = vpop.f32.mrb[0].mxu0
  %v295 = vadd.f32 0.0, %v294
  %v296 = vpop.f32.mrb[0].mxu0
  %297 = vmatprep.mubr.f32.mxu0 0.0
  %298 = vmatmul.mubr.f32.gmra.mrb[0].mxu0 %v110
  %v299 = vpop.f32.mrb[0].mxu0
  %v300 = vadd.f32 0.0, %v299
  %v301 = vpop.f32.mrb[0].mxu0
  %302 = vmatprep.mubr.f32.mxu0 0.0
  %303 = vmatmul.mubr.f32.gmra.mrb[0].mxu0 %v113
  %v304 = vpop.f32.mrb[0].mxu0
  %v305 = vadd.f32 0.0, %v304
  %v306 = vpop.f32.mrb[0].mxu0
  %307 = vmatprep.mubr.f32.mxu0 0.0
  %308 = vmatmul.mubr.f32.gmra.mrb[0].mxu0 %v116
  %v309 = vpop.f32.mrb[0].mxu0
  %v310 = vadd.f32 0.0, %v309
  %v311 = vpop.f32.mrb[0].mxu0
  %312 = vmatprep.mubr.f32.mxu0 0.0
  %313 = vmatmul.mubr.f32.gmra.mrb[0].mxu0 %v119
  %v314 = vpop.f32.mrb[0].mxu0
  %v315 = vadd.f32 0.0, %v314
  %v316 = vpop.f32.mrb[0].mxu0
  %317 = vmatprep.mubr.f32.mxu0 0.0
  %318 = vmatmul.mubr.f32.gmra.mrb[0].mxu0 %v122
  %v319 = vpop.f32.mrb[0].mxu0
  %v320 = vadd.f32 0.0, %v319
  %v321 = vpop.f32.mrb[0].mxu0
  %322 = vmatprep.mubr.f32.mxu0 0.0
  %323 = vmatmul.mubr.f32.gmra.mrb[0].mxu0 %v125
  %v324 = vpop.f32.mrb[0].mxu0
  %v325 = vadd.f32 0.0, %v324
  %v326 = vpop.f32.mrb[0].mxu0
  %327 = vmatprep.mubr.f32.mxu0 0.0
  %328 = vmatmul.mubr.f32.gmra.mrb[0].mxu0 %v128
  %v329 = vpop.f32.mrb[0].mxu0
  %v330 = vadd.f32 0.0, %v329
  %v331 = vpop.f32.mrb[0].mxu0
  %332 = vmatprep.mubr.f32.mxu0 0.0
  %333 = vmatmul.mubr.f32.gmra.mrb[0].mxu0 %v131
  %v334 = vpop.f32.mrb[0].mxu0
  %v335 = vadd.f32 0.0, %v334
  %v336 = vpop.f32.mrb[0].mxu0
  %337 = vmatprep.mubr.f32.mxu0 0.0
  %338 = vmatmul.mubr.f32.gmra.mrb[0].mxu0 %v134
  %v339 = vpop.f32.mrb[0].mxu0
  %v340 = vadd.f32 0.0, %v339
  %v341 = vpop.f32.mrb[0].mxu0
  %342 = vmatprep.mubr.f32.mxu0 0.0
  %343 = vmatmul.mubr.f32.gmra.mrb[0].mxu0 %v137
  %v344 = vpop.f32.mrb[0].mxu0
  %v345 = vadd.f32 0.0, %v344
  %v346 = vpop.f32.mrb[0].mxu0
  %347 = vmatprep.mubr.f32.mxu0 0.0
  %348 = vmatmul.mubr.f32.gmra.mrb[0].mxu0 %v140
  %v349 = vpop.f32.mrb[0].mxu0
  %v350 = vadd.f32 0.0, %v349
  %v351 = vpop.f32.mrb[0].mxu0
  %352 = vmatprep.mubr.f32.mxu0 0.0
  %353 = vmatmul.mubr.f32.gmra.mrb[0].mxu0 %v143
  %v354 = vpop.f32.mrb[0].mxu0
  %v355 = vadd.f32 0.0, %v354
  %v356 = vpop.f32.mrb[0].mxu0
  %357 = vmatprep.mubr.f32.mxu0 0.0
  %358 = vmatmul.mubr.f32.gmra.mrb[0].mxu0 %v146
  %v359 = vpop.f32.mrb[0].mxu0
  %v360 = vadd.f32 0.0, %v359
  %v361 = vpop.f32.mrb[0].mxu0
  %362 = vmatprep.mubr.f32.mxu0 0.0
  %363 = vmatmul.mubr.f32.gmra.mrb[0].mxu0 %v149
  %v364 = vpop.f32.mrb[0].mxu0
  %v365 = vadd.f32 0.0, %v364
  %v366 = vpop.f32.mrb[0].mxu0
  %367 = vmatprep.mubr.f32.mxu0 0.0
  %368 = vmatmul.mubr.f32.gmra.mrb[0].mxu0 %v152
  %v369 = vpop.f32.mrb[0].mxu0
  %v370 = vadd.f32 0.0, %v369
  %v371 = vpop.f32.mrb[0].mxu0
  %372 = vmatprep.mubr.f32.mxu0 0.0
  %373 = vmatmul.mubr.f32.gmra.mrb[0].mxu0 %v155
  %v374 = vpop.f32.mrb[0].mxu0
  %v375 = vadd.f32 0.0, %v374
  %v376 = vpop.f32.mrb[0].mxu0
  %377 = vmatprep.mubr.f32.mxu0 0.0
  %378 = vmatmul.mubr.f32.gmra.mrb[0].mxu0 %v158
  %v379 = vpop.f32.mrb[0].mxu0
  %v380 = vadd.f32 0.0, %v379
  %v381 = vpop.f32.mrb[0].mxu0
  %382 = vmatprep.mubr.f32.mxu0 0.0
  %383 = vmatmul.mubr.f32.gmra.mrb[0].mxu0 %v161
  %v384 = vpop.f32.mrb[0].mxu0
  %v385 = vadd.f32 0.0, %v384
  %v386 = vpop.f32.mrb[0].mxu0
  %387 = vdwg.mxu0
  %v388 = vmul.f32 %v18, %v18
  %v389 = vmul.f32 %v19, %v19
  %v390 = vmul.f32 %v20, %v20
  %v391 = vmul.f32 %v21, %v21
  %v392 = vmul.f32 %v22, %v22
  %v393 = vmul.f32 %v23, %v23
  %v394 = vmul.f32 %v24, %v24
  %v395 = vmul.f32 %v25, %v25
  %v396 = vmul.f32 %v26, %v26
  %v397 = vmul.f32 %v27, %v27
  %v398 = vmul.f32 %v28, %v28
  %v399 = vmul.f32 %v29, %v29
  %v400 = vmul.f32 %v30, %v30
  %v401 = vmul.f32 %v31, %v31
  %v402 = vmul.f32 %v32, %v32
  %v403 = vmul.f32 %v33, %v33
  %v404 = vmul.f32 %v34, %v34
  %v405 = vmul.f32 %v35, %v35
  %v406 = vmul.f32 %v36, %v36
  %v407 = vmul.f32 %v37, %v37
  %v408 = vmul.f32 %v38, %v38
  %v409 = vmul.f32 %v39, %v39
  %v410 = vmul.f32 %v40, %v40
  %v411 = vmul.f32 %v41, %v41
  %v412 = vmul.f32 %v42, %v42
  %v413 = vmul.f32 %v43, %v43
  %v414 = vmul.f32 %v44, %v44
  %v415 = vmul.f32 %v45, %v45
  %v416 = vmul.f32 %v46, %v46
  %v417 = vmul.f32 %v47, %v47
  %v418 = vmul.f32 %v48, %v48
  %v419 = vmul.f32 %v49, %v49
  %v421 = vsel %vm66, %v388, 0
  %v424 = vsel %vm66, %v389, 0
  %v427 = vsel %vm66, %v390, 0
  %v430 = vsel %vm66, %v391, 0
  %v433 = vsel %vm66, %v392, 0
  %v436 = vsel %vm66, %v393, 0
  %v439 = vsel %vm66, %v394, 0
  %v442 = vsel %vm66, %v395, 0
  %v445 = vsel %vm66, %v396, 0
  %v448 = vsel %vm66, %v397, 0
  %v451 = vsel %vm66, %v398, 0
  %v454 = vsel %vm66, %v399, 0
  %v457 = vsel %vm66, %v400, 0
  %v460 = vsel %vm66, %v401, 0
  %v463 = vsel %vm66, %v402, 0
  %v466 = vsel %vm66, %v403, 0
  %v469 = vsel %vm66, %v404, 0
  %v472 = vsel %vm66, %v405, 0
  %v475 = vsel %vm66, %v406, 0
  %v478 = vsel %vm66, %v407, 0
  %v481 = vsel %vm66, %v408, 0
  %v484 = vsel %vm66, %v409, 0
  %v487 = vsel %vm66, %v410, 0
  %v490 = vsel %vm66, %v411, 0
  %v493 = vsel %vm66, %v412, 0
  %v496 = vsel %vm66, %v413, 0
  %v499 = vsel %vm66, %v414, 0
  %v502 = vsel %vm66, %v415, 0
  %v505 = vsel %vm66, %v416, 0
  %v508 = vsel %vm66, %v417, 0
  %v511 = vsel %vm66, %v418, 0
  %v514 = vsel %vm66, %v419, 0
  %516 = vmatprep.subr.mxu0 0.0
  %517 = vmatpush1.msra.mxu0 %v58
  %518 = vmatprep.subr.mxu0 0.0
  %519 = vmatpush1.msra.mxu0 %v59
  %520 = vmatprep.subr.mxu0 0.0
  %521 = vmatpush1.msra.mxu0 %v60
  %522 = vmatprep.subr.mxu0 0.0
  %523 = vmatpush1.msra.mxu0 %v61
  %524 = vmatprep.subr.mxu0 0.0
  %525 = vmatpush1.msra.mxu0 %v62
  %526 = vmatprep.subr.mxu0 0.0
  %527 = vmatpush1.msra.mxu0 %v63
  %528 = vmatprep.subr.mxu0 0.0
  %529 = vmatpush1.msra.mxu0 %v64
  %530 = vmatprep.subr.mxu0 0.0
  %531 = vmatpush1.msra.mxu0 %v65
  %532 = vmatprep.subr.mxu0 0.0
  %533 = vmatpush1.msra.mxu0 0.0
  %534 = vmatprep.subr.mxu0 0.0
  %535 = vmatpush1.msra.mxu0 0.0
  %536 = vmatprep.subr.mxu0 0.0
  %537 = vmatpush1.msra.mxu0 0.0
  %538 = vmatprep.subr.mxu0 0.0
  %539 = vmatpush1.msra.mxu0 0.0
  %540 = vmatprep.subr.mxu0 0.0
  %541 = vmatpush1.msra.mxu0 0.0
  %542 = vmatprep.subr.mxu0 0.0
  %543 = vmatpush1.msra.mxu0 0.0
  %544 = vmatprep.subr.mxu0 0.0
  %545 = vmatpush1.msra.mxu0 0.0
  %546 = vmatprep.subr.mxu0 0.0
  %547 = vmatpush1.msra.mxu0 0.0
  %548 = vmatprep.subr.mxu0 0.0
  %549 = vmatpush1.msra.mxu0 0.0
  %550 = vmatprep.subr.mxu0 0.0
  %551 = vmatpush1.msra.mxu0 0.0
  %552 = vmatprep.subr.mxu0 0.0
  %553 = vmatpush1.msra.mxu0 0.0
  %554 = vmatprep.subr.mxu0 0.0
  %555 = vmatpush1.msra.mxu0 0.0
  %556 = vmatprep.subr.mxu0 0.0
  %557 = vmatpush1.msra.mxu0 0.0
  %558 = vmatprep.subr.mxu0 0.0
  %559 = vmatpush1.msra.mxu0 0.0
  %560 = vmatprep.subr.mxu0 0.0
  %561 = vmatpush1.msra.mxu0 0.0
  %562 = vmatprep.subr.mxu0 0.0
  %563 = vmatpush1.msra.mxu0 0.0
  %564 = vmatprep.subr.mxu0 0.0
  %565 = vmatpush1.msra.mxu0 0.0
  %566 = vmatprep.subr.mxu0 0.0
  %567 = vmatpush1.msra.mxu0 0.0
  %568 = vmatprep.subr.mxu0 0.0
  %569 = vmatpush1.msra.mxu0 0.0
  %570 = vmatprep.subr.mxu0 0.0
  %571 = vmatpush1.msra.mxu0 0.0
  %572 = vmatprep.subr.mxu0 0.0
  %573 = vmatpush1.msra.mxu0 0.0
  %574 = vmatprep.subr.mxu0 0.0
  %575 = vmatpush1.msra.mxu0 0.0
  %576 = vmatprep.subr.mxu0 0.0
  %577 = vmatpush1.msra.mxu0 0.0
  %578 = vmatprep.subr.mxu0 0.0
  %579 = vmatpush1.msra.mxu0 0.0
  %580 = vmatprep.mubr.f32.mxu0 0.0
  %581 = vmatmul.mubr.f32.gmra.mrb[0].mxu0 %v421
  %v582 = vpop.f32.mrb[0].mxu0
  %v583 = vadd.f32 0.0, %v582
  %v584 = vpop.f32.mrb[0].mxu0
  %585 = vmatprep.mubr.f32.mxu0 0.0
  %586 = vmatmul.mubr.f32.gmra.mrb[0].mxu0 %v424
  %v587 = vpop.f32.mrb[0].mxu0
  %v588 = vadd.f32 0.0, %v587
  %v589 = vpop.f32.mrb[0].mxu0
  %590 = vmatprep.mubr.f32.mxu0 0.0
  %591 = vmatmul.mubr.f32.gmra.mrb[0].mxu0 %v427
  %v592 = vpop.f32.mrb[0].mxu0
  %v593 = vadd.f32 0.0, %v592
  %v594 = vpop.f32.mrb[0].mxu0
  %595 = vmatprep.mubr.f32.mxu0 0.0
  %596 = vmatmul.mubr.f32.gmra.mrb[0].mxu0 %v430
  %v597 = vpop.f32.mrb[0].mxu0
  %v598 = vadd.f32 0.0, %v597
  %v599 = vpop.f32.mrb[0].mxu0
  %600 = vmatprep.mubr.f32.mxu0 0.0
  %601 = vmatmul.mubr.f32.gmra.mrb[0].mxu0 %v433
  %v602 = vpop.f32.mrb[0].mxu0
  %v603 = vadd.f32 0.0, %v602
  %v604 = vpop.f32.mrb[0].mxu0
  %605 = vmatprep.mubr.f32.mxu0 0.0
  %606 = vmatmul.mubr.f32.gmra.mrb[0].mxu0 %v436
  %v607 = vpop.f32.mrb[0].mxu0
  %v608 = vadd.f32 0.0, %v607
  %v609 = vpop.f32.mrb[0].mxu0
  %610 = vmatprep.mubr.f32.mxu0 0.0
  %611 = vmatmul.mubr.f32.gmra.mrb[0].mxu0 %v439
  %v612 = vpop.f32.mrb[0].mxu0
  %v613 = vadd.f32 0.0, %v612
  %v614 = vpop.f32.mrb[0].mxu0
  %615 = vmatprep.mubr.f32.mxu0 0.0
  %616 = vmatmul.mubr.f32.gmra.mrb[0].mxu0 %v442
  %v617 = vpop.f32.mrb[0].mxu0
  %v618 = vadd.f32 0.0, %v617
  %v619 = vpop.f32.mrb[0].mxu0
  %620 = vmatprep.mubr.f32.mxu0 0.0
  %621 = vmatmul.mubr.f32.gmra.mrb[0].mxu0 %v445
  %v622 = vpop.f32.mrb[0].mxu0
  %v623 = vadd.f32 0.0, %v622
  %v624 = vpop.f32.mrb[0].mxu0
  %625 = vmatprep.mubr.f32.mxu0 0.0
  %626 = vmatmul.mubr.f32.gmra.mrb[0].mxu0 %v448
  %v627 = vpop.f32.mrb[0].mxu0
  %v628 = vadd.f32 0.0, %v627
  %v629 = vpop.f32.mrb[0].mxu0
  %630 = vmatprep.mubr.f32.mxu0 0.0
  %631 = vmatmul.mubr.f32.gmra.mrb[0].mxu0 %v451
  %v632 = vpop.f32.mrb[0].mxu0
  %v633 = vadd.f32 0.0, %v632
  %v634 = vpop.f32.mrb[0].mxu0
  %635 = vmatprep.mubr.f32.mxu0 0.0
  %636 = vmatmul.mubr.f32.gmra.mrb[0].mxu0 %v454
  %v637 = vpop.f32.mrb[0].mxu0
  %v638 = vadd.f32 0.0, %v637
  %v639 = vpop.f32.mrb[0].mxu0
  %640 = vmatprep.mubr.f32.mxu0 0.0
  %641 = vmatmul.mubr.f32.gmra.mrb[0].mxu0 %v457
  %v642 = vpop.f32.mrb[0].mxu0
  %v643 = vadd.f32 0.0, %v642
  %v644 = vpop.f32.mrb[0].mxu0
  %645 = vmatprep.mubr.f32.mxu0 0.0
  %646 = vmatmul.mubr.f32.gmra.mrb[0].mxu0 %v460
  %v647 = vpop.f32.mrb[0].mxu0
  %v648 = vadd.f32 0.0, %v647
  %v649 = vpop.f32.mrb[0].mxu0
  %650 = vmatprep.mubr.f32.mxu0 0.0
  %651 = vmatmul.mubr.f32.gmra.mrb[0].mxu0 %v463
  %v652 = vpop.f32.mrb[0].mxu0
  %v653 = vadd.f32 0.0, %v652
  %v654 = vpop.f32.mrb[0].mxu0
  %655 = vmatprep.mubr.f32.mxu0 0.0
  %656 = vmatmul.mubr.f32.gmra.mrb[0].mxu0 %v466
  %v657 = vpop.f32.mrb[0].mxu0
  %v658 = vadd.f32 0.0, %v657
  %v659 = vpop.f32.mrb[0].mxu0
  %660 = vmatprep.mubr.f32.mxu0 0.0
  %661 = vmatmul.mubr.f32.gmra.mrb[0].mxu0 %v469
  %v662 = vpop.f32.mrb[0].mxu0
  %v663 = vadd.f32 0.0, %v662
  %v664 = vpop.f32.mrb[0].mxu0
  %665 = vmatprep.mubr.f32.mxu0 0.0
  %666 = vmatmul.mubr.f32.gmra.mrb[0].mxu0 %v472
  %v667 = vpop.f32.mrb[0].mxu0
  %v668 = vadd.f32 0.0, %v667
  %v669 = vpop.f32.mrb[0].mxu0
  %670 = vmatprep.mubr.f32.mxu0 0.0
  %671 = vmatmul.mubr.f32.gmra.mrb[0].mxu0 %v475
  %v672 = vpop.f32.mrb[0].mxu0
  %v673 = vadd.f32 0.0, %v672
  %v674 = vpop.f32.mrb[0].mxu0
  %675 = vmatprep.mubr.f32.mxu0 0.0
  %676 = vmatmul.mubr.f32.gmra.mrb[0].mxu0 %v478
  %v677 = vpop.f32.mrb[0].mxu0
  %v678 = vadd.f32 0.0, %v677
  %v679 = vpop.f32.mrb[0].mxu0
  %680 = vmatprep.mubr.f32.mxu0 0.0
  %681 = vmatmul.mubr.f32.gmra.mrb[0].mxu0 %v481
  %v682 = vpop.f32.mrb[0].mxu0
  %v683 = vadd.f32 0.0, %v682
  %v684 = vpop.f32.mrb[0].mxu0
  %685 = vmatprep.mubr.f32.mxu0 0.0
  %686 = vmatmul.mubr.f32.gmra.mrb[0].mxu0 %v484
  %v687 = vpop.f32.mrb[0].mxu0
  %v688 = vadd.f32 0.0, %v687
  %v689 = vpop.f32.mrb[0].mxu0
  %690 = vmatprep.mubr.f32.mxu0 0.0
  %691 = vmatmul.mubr.f32.gmra.mrb[0].mxu0 %v487
  %v692 = vpop.f32.mrb[0].mxu0
  %v693 = vadd.f32 0.0, %v692
  %v694 = vpop.f32.mrb[0].mxu0
  %695 = vmatprep.mubr.f32.mxu0 0.0
  %696 = vmatmul.mubr.f32.gmra.mrb[0].mxu0 %v490
  %v697 = vpop.f32.mrb[0].mxu0
  %v698 = vadd.f32 0.0, %v697
  %v699 = vpop.f32.mrb[0].mxu0
  %700 = vmatprep.mubr.f32.mxu0 0.0
  %701 = vmatmul.mubr.f32.gmra.mrb[0].mxu0 %v493
  %v702 = vpop.f32.mrb[0].mxu0
  %v703 = vadd.f32 0.0, %v702
  %v704 = vpop.f32.mrb[0].mxu0
  %705 = vmatprep.mubr.f32.mxu0 0.0
  %706 = vmatmul.mubr.f32.gmra.mrb[0].mxu0 %v496
  %v707 = vpop.f32.mrb[0].mxu0
  %v708 = vadd.f32 0.0, %v707
  %v709 = vpop.f32.mrb[0].mxu0
  %710 = vmatprep.mubr.f32.mxu0 0.0
  %711 = vmatmul.mubr.f32.gmra.mrb[0].mxu0 %v499
  %v712 = vpop.f32.mrb[0].mxu0
  %v713 = vadd.f32 0.0, %v712
  %v714 = vpop.f32.mrb[0].mxu0
  %715 = vmatprep.mubr.f32.mxu0 0.0
  %716 = vmatmul.mubr.f32.gmra.mrb[0].mxu0 %v502
  %v717 = vpop.f32.mrb[0].mxu0
  %v718 = vadd.f32 0.0, %v717
  %v719 = vpop.f32.mrb[0].mxu0
  %720 = vmatprep.mubr.f32.mxu0 0.0
  %721 = vmatmul.mubr.f32.gmra.mrb[0].mxu0 %v505
  %v722 = vpop.f32.mrb[0].mxu0
  %v723 = vadd.f32 0.0, %v722
  %v724 = vpop.f32.mrb[0].mxu0
  %725 = vmatprep.mubr.f32.mxu0 0.0
  %726 = vmatmul.mubr.f32.gmra.mrb[0].mxu0 %v508
  %v727 = vpop.f32.mrb[0].mxu0
  %v728 = vadd.f32 0.0, %v727
  %v729 = vpop.f32.mrb[0].mxu0
  %730 = vmatprep.mubr.f32.mxu0 0.0
  %731 = vmatmul.mubr.f32.gmra.mrb[0].mxu0 %v511
  %v732 = vpop.f32.mrb[0].mxu0
  %v733 = vadd.f32 0.0, %v732
  %v734 = vpop.f32.mrb[0].mxu0
  %735 = vmatprep.mubr.f32.mxu0 0.0
  %736 = vmatmul.mubr.f32.gmra.mrb[0].mxu0 %v514
  %v737 = vpop.f32.mrb[0].mxu0
  %v738 = vadd.f32 0.0, %v737
  %v739 = vpop.f32.mrb[0].mxu0
  %740 = vdwg.mxu0
  %v741 = vlaneseq
  %v742 = vand.u32 %v741, 127
  %vm743 = vcmp.lt.s32.totalorder %v742, 16
  %v744 = vmul.f32 %v230, %v230
  %v745 = vmul.f32 %v235, %v235
  %v746 = vmul.f32 %v240, %v240
  %v747 = vmul.f32 %v245, %v245
  %v748 = vmul.f32 %v250, %v250
  %v749 = vmul.f32 %v255, %v255
  %v750 = vmul.f32 %v260, %v260
  %v751 = vmul.f32 %v265, %v265
  %v752 = vmul.f32 %v270, %v270
  %v753 = vmul.f32 %v275, %v275
  %v754 = vmul.f32 %v280, %v280
  %v755 = vmul.f32 %v285, %v285
  %v756 = vmul.f32 %v290, %v290
  %v757 = vmul.f32 %v295, %v295
  %v758 = vmul.f32 %v300, %v300
  %v759 = vmul.f32 %v305, %v305
  %v760 = vmul.f32 %v310, %v310
  %v761 = vmul.f32 %v315, %v315
  %v762 = vmul.f32 %v320, %v320
  %v763 = vmul.f32 %v325, %v325
  %v764 = vmul.f32 %v330, %v330
  %v765 = vmul.f32 %v335, %v335
  %v766 = vmul.f32 %v340, %v340
  %v767 = vmul.f32 %v345, %v345
  %v768 = vmul.f32 %v350, %v350
  %v769 = vmul.f32 %v355, %v355
  %v770 = vmul.f32 %v360, %v360
  %v771 = vmul.f32 %v365, %v365
  %v772 = vmul.f32 %v370, %v370
  %v773 = vmul.f32 %v375, %v375
  %v774 = vmul.f32 %v380, %v380
  %v775 = vmul.f32 %v385, %v385
  %v776 = vsub.f32 %v744, %v583
  %v777 = vsub.f32 %v745, %v588
  %v778 = vsub.f32 %v746, %v593
  %v779 = vsub.f32 %v747, %v598
  %v780 = vsub.f32 %v748, %v603
  %v781 = vsub.f32 %v749, %v608
  %v782 = vsub.f32 %v750, %v613
  %v783 = vsub.f32 %v751, %v618
  %v784 = vsub.f32 %v752, %v623
  %v785 = vsub.f32 %v753, %v628
  %v786 = vsub.f32 %v754, %v633
  %v787 = vsub.f32 %v755, %v638
  %v788 = vsub.f32 %v756, %v643
  %v789 = vsub.f32 %v757, %v648
  %v790 = vsub.f32 %v758, %v653
  %v791 = vsub.f32 %v759, %v658
  %v792 = vsub.f32 %v760, %v663
  %v793 = vsub.f32 %v761, %v668
  %v794 = vsub.f32 %v762, %v673
  %v795 = vsub.f32 %v763, %v678
  %v796 = vsub.f32 %v764, %v683
  %v797 = vsub.f32 %v765, %v688
  %v798 = vsub.f32 %v766, %v693
  %v799 = vsub.f32 %v767, %v698
  %v800 = vsub.f32 %v768, %v703
  %v801 = vsub.f32 %v769, %v708
  %v802 = vsub.f32 %v770, %v713
  %v803 = vsub.f32 %v771, %v718
  %v804 = vsub.f32 %v772, %v723
  %v805 = vsub.f32 %v773, %v728
  %v806 = vsub.f32 %v774, %v733
  %v807 = vsub.f32 %v775, %v738
  %v808 = vsel %vm743, %v776, 0.0
  %v809 = vsel %vm743, %v777, 0.0
  %v810 = vsel %vm743, %v778, 0.0
  %v811 = vsel %vm743, %v779, 0.0
  %v812 = vsel %vm743, %v780, 0.0
  %v813 = vsel %vm743, %v781, 0.0
  %v814 = vsel %vm743, %v782, 0.0
  %v815 = vsel %vm743, %v783, 0.0
  %v816 = vsel %vm743, %v784, 0.0
  %v817 = vsel %vm743, %v785, 0.0
  %v818 = vsel %vm743, %v786, 0.0
  %v819 = vsel %vm743, %v787, 0.0
  %v820 = vsel %vm743, %v788, 0.0
  %v821 = vsel %vm743, %v789, 0.0
  %v822 = vsel %vm743, %v790, 0.0
  %v823 = vsel %vm743, %v791, 0.0
  %v824 = vsel %vm743, %v792, 0.0
  %v825 = vsel %vm743, %v793, 0.0
  %v826 = vsel %vm743, %v794, 0.0
  %v827 = vsel %vm743, %v795, 0.0
  %v828 = vsel %vm743, %v796, 0.0
  %v829 = vsel %vm743, %v797, 0.0
  %v830 = vsel %vm743, %v798, 0.0
  %v831 = vsel %vm743, %v799, 0.0
  %v832 = vsel %vm743, %v800, 0.0
  %v833 = vsel %vm743, %v801, 0.0
  %v834 = vsel %vm743, %v802, 0.0
  %v835 = vsel %vm743, %v803, 0.0
  %v836 = vsel %vm743, %v804, 0.0
  %v837 = vsel %vm743, %v805, 0.0
  %v838 = vsel %vm743, %v806, 0.0
  %v839 = vsel %vm743, %v807, 0.0
  %840 = vadd.xlane.f32.xlu0 %v808
  %v841 = vpop.xlane.xlu0 %840
  %842 = vadd.xlane.f32.xlu0 %v809
  %v843 = vpop.xlane.xlu0 %842
  %844 = vadd.xlane.f32.xlu0 %v810
  %v845 = vpop.xlane.xlu0 %844
  %846 = vadd.xlane.f32.xlu0 %v811
  %v847 = vpop.xlane.xlu0 %846
  %848 = vadd.xlane.f32.xlu0 %v812
  %v849 = vpop.xlane.xlu0 %848
  %850 = vadd.xlane.f32.xlu0 %v813
  %v851 = vpop.xlane.xlu0 %850
  %852 = vadd.xlane.f32.xlu0 %v814
  %v853 = vpop.xlane.xlu0 %852
  %854 = vadd.xlane.f32.xlu0 %v815
  %v855 = vpop.xlane.xlu0 %854
  %856 = vadd.xlane.f32.xlu0 %v816
  %v857 = vpop.xlane.xlu0 %856
  %858 = vadd.xlane.f32.xlu0 %v817
  %v859 = vpop.xlane.xlu0 %858
  %860 = vadd.xlane.f32.xlu0 %v818
  %v861 = vpop.xlane.xlu0 %860
  %862 = vadd.xlane.f32.xlu0 %v819
  %v863 = vpop.xlane.xlu0 %862
  %864 = vadd.xlane.f32.xlu0 %v820
  %v865 = vpop.xlane.xlu0 %864
  %866 = vadd.xlane.f32.xlu0 %v821
  %v867 = vpop.xlane.xlu0 %866
  %868 = vadd.xlane.f32.xlu0 %v822
  %v869 = vpop.xlane.xlu0 %868
  %870 = vadd.xlane.f32.xlu0 %v823
  %v871 = vpop.xlane.xlu0 %870
  %872 = vadd.xlane.f32.xlu0 %v824
  %v873 = vpop.xlane.xlu0 %872
  %874 = vadd.xlane.f32.xlu0 %v825
  %v875 = vpop.xlane.xlu0 %874
  %876 = vadd.xlane.f32.xlu0 %v826
  %v877 = vpop.xlane.xlu0 %876
  %878 = vadd.xlane.f32.xlu0 %v827
  %v879 = vpop.xlane.xlu0 %878
  %880 = vadd.xlane.f32.xlu0 %v828
  %v881 = vpop.xlane.xlu0 %880
  %882 = vadd.xlane.f32.xlu0 %v829
  %v883 = vpop.xlane.xlu0 %882
  %884 = vadd.xlane.f32.xlu0 %v830
  %v885 = vpop.xlane.xlu0 %884
  %886 = vadd.xlane.f32.xlu0 %v831
  %v887 = vpop.xlane.xlu0 %886
  %888 = vadd.xlane.f32.xlu0 %v832
  %v889 = vpop.xlane.xlu0 %888
  %890 = vadd.xlane.f32.xlu0 %v833
  %v891 = vpop.xlane.xlu0 %890
  %892 = vadd.xlane.f32.xlu0 %v834
  %v893 = vpop.xlane.xlu0 %892
  %894 = vadd.xlane.f32.xlu0 %v835
  %v895 = vpop.xlane.xlu0 %894
  %896 = vadd.xlane.f32.xlu0 %v836
  %v897 = vpop.xlane.xlu0 %896
  %898 = vadd.xlane.f32.xlu0 %v837
  %v899 = vpop.xlane.xlu0 %898
  %900 = vadd.xlane.f32.xlu0 %v838
  %v901 = vpop.xlane.xlu0 %900
  %902 = vadd.xlane.f32.xlu0 %v839
  %v903 = vpop.xlane.xlu0 %902
  %v904 = vmul.f32 %v841, 0.5
  %v905 = vmul.f32 %v843, 0.5
  %v906 = vmul.f32 %v845, 0.5
  %v907 = vmul.f32 %v847, 0.5
  %v908 = vmul.f32 %v849, 0.5
  %v909 = vmul.f32 %v851, 0.5
  %v910 = vmul.f32 %v853, 0.5
  %v911 = vmul.f32 %v855, 0.5
  %v912 = vmul.f32 %v857, 0.5
  %v913 = vmul.f32 %v859, 0.5
  %v914 = vmul.f32 %v861, 0.5
  %v915 = vmul.f32 %v863, 0.5
  %v916 = vmul.f32 %v865, 0.5
  %v917 = vmul.f32 %v867, 0.5
  %v918 = vmul.f32 %v869, 0.5
  %v919 = vmul.f32 %v871, 0.5
  %v920 = vmul.f32 %v873, 0.5
  %v921 = vmul.f32 %v875, 0.5
  %v922 = vmul.f32 %v877, 0.5
  %v923 = vmul.f32 %v879, 0.5
  %v924 = vmul.f32 %v881, 0.5
  %v925 = vmul.f32 %v883, 0.5
  %v926 = vmul.f32 %v885, 0.5
  %v927 = vmul.f32 %v887, 0.5
  %v928 = vmul.f32 %v889, 0.5
  %v929 = vmul.f32 %v891, 0.5
  %v930 = vmul.f32 %v893, 0.5
  %v931 = vmul.f32 %v895, 0.5
  %v932 = vmul.f32 %v897, 0.5
  %v933 = vmul.f32 %v899, 0.5
  %v934 = vmul.f32 %v901, 0.5
  %v935 = vmul.f32 %v903, 0.5
  %vm936 = vcmp.eq.s32.totalorder %v742, 16
  %v937 = vsel %vm936, %v230, 0.0
  %v938 = vsel %vm936, %v235, 0.0
  %v939 = vsel %vm936, %v240, 0.0
  %v940 = vsel %vm936, %v245, 0.0
  %v941 = vsel %vm936, %v250, 0.0
  %v942 = vsel %vm936, %v255, 0.0
  %v943 = vsel %vm936, %v260, 0.0
  %v944 = vsel %vm936, %v265, 0.0
  %v945 = vsel %vm936, %v270, 0.0
  %v946 = vsel %vm936, %v275, 0.0
  %v947 = vsel %vm936, %v280, 0.0
  %v948 = vsel %vm936, %v285, 0.0
  %v949 = vsel %vm936, %v290, 0.0
  %v950 = vsel %vm936, %v295, 0.0
  %v951 = vsel %vm936, %v300, 0.0
  %v952 = vsel %vm936, %v305, 0.0
  %v953 = vsel %vm936, %v310, 0.0
  %v954 = vsel %vm936, %v315, 0.0
  %v955 = vsel %vm936, %v320, 0.0
  %v956 = vsel %vm936, %v325, 0.0
  %v957 = vsel %vm936, %v330, 0.0
  %v958 = vsel %vm936, %v335, 0.0
  %v959 = vsel %vm936, %v340, 0.0
  %v960 = vsel %vm936, %v345, 0.0
  %v961 = vsel %vm936, %v350, 0.0
  %v962 = vsel %vm936, %v355, 0.0
  %v963 = vsel %vm936, %v360, 0.0
  %v964 = vsel %vm936, %v365, 0.0
  %v965 = vsel %vm936, %v370, 0.0
  %v966 = vsel %vm936, %v375, 0.0
  %v967 = vsel %vm936, %v380, 0.0
  %v968 = vsel %vm936, %v385, 0.0
  %969 = vadd.xlane.f32.xlu0 %v937
  %v970 = vpop.xlane.xlu0 %969
  %971 = vadd.xlane.f32.xlu0 %v938
  %v972 = vpop.xlane.xlu0 %971
  %973 = vadd.xlane.f32.xlu0 %v939
  %v974 = vpop.xlane.xlu0 %973
  %975 = vadd.xlane.f32.xlu0 %v940
  %v976 = vpop.xlane.xlu0 %975
  %977 = vadd.xlane.f32.xlu0 %v941
  %v978 = vpop.xlane.xlu0 %977
  %979 = vadd.xlane.f32.xlu0 %v942
  %v980 = vpop.xlane.xlu0 %979
  %981 = vadd.xlane.f32.xlu0 %v943
  %v982 = vpop.xlane.xlu0 %981
  %983 = vadd.xlane.f32.xlu0 %v944
  %v984 = vpop.xlane.xlu0 %983
  %985 = vadd.xlane.f32.xlu0 %v945
  %v986 = vpop.xlane.xlu0 %985
  %987 = vadd.xlane.f32.xlu0 %v946
  %v988 = vpop.xlane.xlu0 %987
  %989 = vadd.xlane.f32.xlu0 %v947
  %v990 = vpop.xlane.xlu0 %989
  %991 = vadd.xlane.f32.xlu0 %v948
  %v992 = vpop.xlane.xlu0 %991
  %993 = vadd.xlane.f32.xlu0 %v949
  %v994 = vpop.xlane.xlu0 %993
  %995 = vadd.xlane.f32.xlu0 %v950
  %v996 = vpop.xlane.xlu0 %995
  %997 = vadd.xlane.f32.xlu0 %v951
  %v998 = vpop.xlane.xlu0 %997
  %999 = vadd.xlane.f32.xlu0 %v952
  %v1000 = vpop.xlane.xlu0 %999
  %1001 = vadd.xlane.f32.xlu0 %v953
  %v1002 = vpop.xlane.xlu0 %1001
  %1003 = vadd.xlane.f32.xlu0 %v954
  %v1004 = vpop.xlane.xlu0 %1003
  %1005 = vadd.xlane.f32.xlu0 %v955
  %v1006 = vpop.xlane.xlu0 %1005
  %1007 = vadd.xlane.f32.xlu0 %v956
  %v1008 = vpop.xlane.xlu0 %1007
  %1009 = vadd.xlane.f32.xlu0 %v957
  %v1010 = vpop.xlane.xlu0 %1009
  %1011 = vadd.xlane.f32.xlu0 %v958
  %v1012 = vpop.xlane.xlu0 %1011
  %1013 = vadd.xlane.f32.xlu0 %v959
  %v1014 = vpop.xlane.xlu0 %1013
  %1015 = vadd.xlane.f32.xlu0 %v960
  %v1016 = vpop.xlane.xlu0 %1015
  %1017 = vadd.xlane.f32.xlu0 %v961
  %v1018 = vpop.xlane.xlu0 %1017
  %1019 = vadd.xlane.f32.xlu0 %v962
  %v1020 = vpop.xlane.xlu0 %1019
  %1021 = vadd.xlane.f32.xlu0 %v963
  %v1022 = vpop.xlane.xlu0 %1021
  %1023 = vadd.xlane.f32.xlu0 %v964
  %v1024 = vpop.xlane.xlu0 %1023
  %1025 = vadd.xlane.f32.xlu0 %v965
  %v1026 = vpop.xlane.xlu0 %1025
  %1027 = vadd.xlane.f32.xlu0 %v966
  %v1028 = vpop.xlane.xlu0 %1027
  %1029 = vadd.xlane.f32.xlu0 %v967
  %v1030 = vpop.xlane.xlu0 %1029
  %1031 = vadd.xlane.f32.xlu0 %v968
  %v1032 = vpop.xlane.xlu0 %1031
  %s1033 = sld [smem:[#allocation2]]
  %v1034 = vstv %s1033
  %v1035 = vadd.f32 %v1034, %v970
  %v1036 = vadd.f32 %v1034, %v972
  %v1037 = vadd.f32 %v1034, %v974
  %v1038 = vadd.f32 %v1034, %v976
  %v1039 = vadd.f32 %v1034, %v978
  %v1040 = vadd.f32 %v1034, %v980
  %v1041 = vadd.f32 %v1034, %v982
  %v1042 = vadd.f32 %v1034, %v984
  %v1043 = vadd.f32 %v1034, %v986
  %v1044 = vadd.f32 %v1034, %v988
  %v1045 = vadd.f32 %v1034, %v990
  %v1046 = vadd.f32 %v1034, %v992
  %v1047 = vadd.f32 %v1034, %v994
  %v1048 = vadd.f32 %v1034, %v996
  %v1049 = vadd.f32 %v1034, %v998
  %v1050 = vadd.f32 %v1034, %v1000
  %v1051 = vadd.f32 %v1034, %v1002
  %v1052 = vadd.f32 %v1034, %v1004
  %v1053 = vadd.f32 %v1034, %v1006
  %v1054 = vadd.f32 %v1034, %v1008
  %v1055 = vadd.f32 %v1034, %v1010
  %v1056 = vadd.f32 %v1034, %v1012
  %v1057 = vadd.f32 %v1034, %v1014
  %v1058 = vadd.f32 %v1034, %v1016
  %v1059 = vadd.f32 %v1034, %v1018
  %v1060 = vadd.f32 %v1034, %v1020
  %v1061 = vadd.f32 %v1034, %v1022
  %v1062 = vadd.f32 %v1034, %v1024
  %v1063 = vadd.f32 %v1034, %v1026
  %v1064 = vadd.f32 %v1034, %v1028
  %v1065 = vadd.f32 %v1034, %v1030
  %v1066 = vadd.f32 %v1034, %v1032
  %v1067 = vadd.f32 %v1035, %v904
  %v1068 = vadd.f32 %v1036, %v905
  %v1069 = vadd.f32 %v1037, %v906
  %v1070 = vadd.f32 %v1038, %v907
  %v1071 = vadd.f32 %v1039, %v908
  %v1072 = vadd.f32 %v1040, %v909
  %v1073 = vadd.f32 %v1041, %v910
  %v1074 = vadd.f32 %v1042, %v911
  %v1075 = vadd.f32 %v1043, %v912
  %v1076 = vadd.f32 %v1044, %v913
  %v1077 = vadd.f32 %v1045, %v914
  %v1078 = vadd.f32 %v1046, %v915
  %v1079 = vadd.f32 %v1047, %v916
  %v1080 = vadd.f32 %v1048, %v917
  %v1081 = vadd.f32 %v1049, %v918
  %v1082 = vadd.f32 %v1050, %v919
  %v1083 = vadd.f32 %v1051, %v920
  %v1084 = vadd.f32 %v1052, %v921
  %v1085 = vadd.f32 %v1053, %v922
  %v1086 = vadd.f32 %v1054, %v923
  %v1087 = vadd.f32 %v1055, %v924
  %v1088 = vadd.f32 %v1056, %v925
  %v1089 = vadd.f32 %v1057, %v926
  %v1090 = vadd.f32 %v1058, %v927
  %v1091 = vadd.f32 %v1059, %v928
  %v1092 = vadd.f32 %v1060, %v929
  %v1093 = vadd.f32 %v1061, %v930
  %v1094 = vadd.f32 %v1062, %v931
  %v1095 = vadd.f32 %v1063, %v932
  %v1096 = vadd.f32 %v1064, %v933
  %v1097 = vadd.f32 %v1065, %v934
  %v1098 = vadd.f32 %v1066, %v935
  %vm1099 = vcmask 7168
  %1100 = vst.msk [vmem:[%s4] sm:$0xff] %vm1099, %v1067
  %1101 = vst.msk [vmem:[%s4 + $0x8] sm:$0xff] %vm1099, %v1068
  %1102 = vst.msk [vmem:[%s4 + $0x10] sm:$0xff] %vm1099, %v1069
  %1103 = vst.msk [vmem:[%s4 + $0x18] sm:$0xff] %vm1099, %v1070
  %1104 = vst.msk [vmem:[%s4 + $0x20] sm:$0xff] %vm1099, %v1071
  %1105 = vst.msk [vmem:[%s4 + $0x28] sm:$0xff] %vm1099, %v1072
  %1106 = vst.msk [vmem:[%s4 + $0x30] sm:$0xff] %vm1099, %v1073
  %1107 = vst.msk [vmem:[%s4 + $0x38] sm:$0xff] %vm1099, %v1074
  %1108 = vst.msk [vmem:[%s4 + $0x40] sm:$0xff] %vm1099, %v1075
  %1109 = vst.msk [vmem:[%s4 + $0x48] sm:$0xff] %vm1099, %v1076
  %1110 = vst.msk [vmem:[%s4 + $0x50] sm:$0xff] %vm1099, %v1077
  %1111 = vst.msk [vmem:[%s4 + $0x58] sm:$0xff] %vm1099, %v1078
  %1112 = vst.msk [vmem:[%s4 + $0x60] sm:$0xff] %vm1099, %v1079
  %1113 = vst.msk [vmem:[%s4 + $0x68] sm:$0xff] %vm1099, %v1080
  %1114 = vst.msk [vmem:[%s4 + $0x70] sm:$0xff] %vm1099, %v1081
  %1115 = vst.msk [vmem:[%s4 + $0x78] sm:$0xff] %vm1099, %v1082
  %1116 = vst.msk [vmem:[%s4 + $0x80] sm:$0xff] %vm1099, %v1083
  %1117 = vst.msk [vmem:[%s4 + $0x88] sm:$0xff] %vm1099, %v1084
  %1118 = vst.msk [vmem:[%s4 + $0x90] sm:$0xff] %vm1099, %v1085
  %1119 = vst.msk [vmem:[%s4 + $0x98] sm:$0xff] %vm1099, %v1086
  %1120 = vst.msk [vmem:[%s4 + $0xa0] sm:$0xff] %vm1099, %v1087
  %1121 = vst.msk [vmem:[%s4 + $0xa8] sm:$0xff] %vm1099, %v1088
  %1122 = vst.msk [vmem:[%s4 + $0xb0] sm:$0xff] %vm1099, %v1089
  %1123 = vst.msk [vmem:[%s4 + $0xb8] sm:$0xff] %vm1099, %v1090
  %1124 = vst.msk [vmem:[%s4 + $0xc0] sm:$0xff] %vm1099, %v1091
  %1125 = vst.msk [vmem:[%s4 + $0xc8] sm:$0xff] %vm1099, %v1092
  %1126 = vst.msk [vmem:[%s4 + $0xd0] sm:$0xff] %vm1099, %v1093
  %1127 = vst.msk [vmem:[%s4 + $0xd8] sm:$0xff] %vm1099, %v1094
  %1128 = vst.msk [vmem:[%s4 + $0xe0] sm:$0xff] %vm1099, %v1095
  %1129 = vst.msk [vmem:[%s4 + $0xe8] sm:$0xff] %vm1099, %v1096
  %1130 = vst.msk [vmem:[%s4 + $0xf0] sm:$0xff] %vm1099, %v1097
  %1131 = vst.msk [vmem:[%s4 + $0xf8] sm:$0xff] %vm1099, %v1098
  // Predicated region
  $region18: #{tpu_custom_call.1} parent=0 // pred_check
    _
  $region19: #{tpu_custom_call.1} parent=0 // pred_check_branch
    %1133 = sbr.rel (0) target = $region21
  $region20: #{tpu_custom_call.1} parent=0 // pred_region
    _
  $region21: #{tpu_custom_call.1} parent=0 // pred_fallthru
    _
  // Predicated region
  $region22: #{tpu_custom_call.1} parent=0 // pred_check
    _
  $region23: #{tpu_custom_call.1} parent=0 // pred_check_branch
    %1135 = sbr.rel (0) target = $region25
  $region24: #{tpu_custom_call.1} parent=0 // pred_region
    _
  $region25: #{tpu_custom_call.1} parent=0 // pred_fallthru
    _

</llo_original>
